<compile_context>
chip_gen: v5e
topology: v5e:2x2
jax: 0.10.0
libtpu: 0.0.40
codegen_flags: <defaults>
</compile_context>

<pallas_src>
import jax
import jax.numpy as jnp
from jax import lax
from jax.experimental import pallas as pl
from jax.experimental.pallas import tpu as pltpu

_LANES = 128


def _round_up(x: int, m: int) -> int:
    return -(-x // m) * m


def _min_sublanes(dtype) -> int:
    """Minimum sublane tile for a dtype: 8 for 32-bit, 16 for bf16/f16, 32 for 8-bit."""
    itemsize = jnp.dtype(dtype).itemsize
    return max(8, (32 // (8 * itemsize)) * 8)


def _make_mse_kernel(*, block_rows: int, bps: int, rows_arr: int):
    """Sum-of-squared-errors kernel.

    block_rows: rows per block; bps: blocks per split (grid axis 1 extent);
    rows_arr:   number of defined rows in the (rows_arr, 128) input arrays.
    """

    def kernel(pred_ref, target_ref, out_ref):
        i = pl.program_id(0)   # split (TensorCore shard on v7x)
        j = pl.program_id(1)   # block within split (reduction axis)

        # Per-split resident (8, 128) accumulator lives in the output block.
        @pl.when(j == 0)
        def _init():
            out_ref[...] = jnp.zeros_like(out_ref)

        # Cast AFTER the load: HBM traffic stays in the input's native dtype.
        p = pred_ref[...].astype(jnp.float32)
        t = target_ref[...].astype(jnp.float32)
        d = p - t
        sq = d * d                                    # (block_rows, 128)

        # Logical (unclamped) global block index -> how many rows of this
        # block are defined data.  Everything below rows_arr is either real
        # data or explicit zero padding (contributes 0); rows at or beyond
        # rows_arr are Pallas OOB reads (undefined) and must be masked out.
        g = i * bps + j
        valid_rows = rows_arr - g * block_rows

        @pl.when(valid_rows >= block_rows)            # hot path: mask-free
        def _full():
            out_ref[...] += jnp.sum(
                sq.reshape(block_rows // 8, 8, _LANES), axis=0)

        @pl.when(valid_rows < block_rows)             # edge / fully-OOB blocks
        def _edge():
            row_ids = lax.broadcasted_iota(jnp.int32, (block_rows, _LANES), 0)
            sq_m = jnp.where(row_ids < valid_rows, sq, 0.0)   # select, not mul
            out_ref[...] += jnp.sum(
                sq_m.reshape(block_rows // 8, 8, _LANES), axis=0)

    return kernel


def age_only_loss(pred, target, *, block_rows: int = 4096, n_split: int = 2):
    """Pallas implementation of AgeOnlyLoss(task='regression').forward."""
    pred_flat = pred.reshape(-1)      # pred.squeeze()
    target_flat = target.reshape(-1)
    n = pred_flat.shape[0]
    assert target_flat.shape[0] == n, "pred / target batch mismatch"

    # dtype-aware sublane floor (8 f32, 16 bf16, 32 int8/fp8).
    floor = max(_min_sublanes(pred_flat.dtype), _min_sublanes(target_flat.dtype))
    rows_needed = pl.cdiv(n, _LANES)

    if rows_needed < block_rows:
        # Small input: one block covering the whole (tiny) padded array.
        block_rows = _round_up(max(rows_needed, 1), floor)
        rows_arr = block_rows
    else:
        # Large input: NO padding to a block multiple; only to the next
        # multiple of 128 (free when 128 | n).  Ragged last block is masked
        # inside the kernel.
        block_rows = _round_up(block_rows, floor)
        rows_arr = rows_needed

    padded_n = rows_arr * _LANES

    def _to_lane_dense(x):
        if padded_n != n:
            # Zero padding: padded elements of BOTH arrays are 0 -> d == 0,
            # so they contribute nothing to the sum of squares.
            x = jnp.pad(x, (0, padded_n - n))
        return x.reshape(rows_arr, _LANES)

    pred_2d = _to_lane_dense(pred_flat)
    target_2d = _to_lane_dense(target_flat)

    nb = pl.cdiv(rows_arr, block_rows)        # blocks actually needed
    bps = pl.cdiv(nb, n_split)                # blocks per split

    def in_index(i, j):
        # Clamp so the DMA never targets a block fully outside the array;
        # the in-kernel row mask (based on the UNclamped index) zeroes any
        # duplicated / out-of-range block's contribution.
        return (jnp.minimum(i * bps + j, nb - 1), 0)

    kernel = _make_mse_kernel(block_rows=block_rows, bps=bps, rows_arr=rows_arr)

    # Per-step VMEM: 2 inputs x 2 buffers x (block_rows*128*4B) = 8 MiB at
    # block_rows=4096 f32; vmem_limit_bytes=32 MiB keeps headroom on v5e too.
    partials = pl.pallas_call(
        kernel,
        out_shape=jax.ShapeDtypeStruct((n_split * 8, _LANES), jnp.float32),
        grid=(n_split, bps),
        in_specs=[
            pl.BlockSpec((block_rows, _LANES), in_index),
            pl.BlockSpec((block_rows, _LANES), in_index),
        ],
        # Lane-dense (8,128) accumulator per split, resident across axis 1.
        out_specs=pl.BlockSpec((8, _LANES), lambda i, j: (i, 0)),
        compiler_params=pltpu.CompilerParams(
            dimension_semantics=("parallel", "arbitrary"),
            allow_input_fusion=[True, True],
            vmem_limit_bytes=32 * 1024 * 1024,
        ),
    )(pred_2d, target_2d)

    # Final cross-lane/split reduction and the 1/B (mean) scale stay in the
    # wrapper: one tiny XLA reduce, and no kernel recompile tied to 1/B.
    return jnp.sum(partials) / jnp.float32(n)


def _reference_loss(pred, target):
    """Pure-JAX reference mirroring the PyTorch module (regression task)."""
    return jnp.mean((pred.reshape(-1).astype(jnp.float32)
                     - target.reshape(-1).astype(jnp.float32)) ** 2)


if __name__ == "__main__":
    key = jax.random.PRNGKey(0)
    k1, k2 = jax.random.split(key, 2)

    # Module-consistent shapes: pred (B, 1) regression head output, target (B,).
    # B deliberately NOT a multiple of 128 to exercise the ragged/masked path.
    B = 200
    pred = jax.random.normal(k1, (B, 1), jnp.float32) * 10.0 + 30.0
    target = jax.random.uniform(k2, (B,), jnp.float32, minval=0.0, maxval=80.0)

    loss = jax.block_until_ready(age_only_loss(pred, target))
    ref = jax.block_until_ready(_reference_loss(pred, target))
    assert jnp.allclose(loss, ref, rtol=1e-4, atol=1e-4), (loss, ref)

    print("KERNEL_OK")
</pallas_src>

<mosaic_0001>
module attributes {stable_mosaic.version = 11 : i64} {
  func.func @kernel(%arg0: i32, %arg1: i32, %arg2: memref<8x128xf32, #tpu.memory_space<vmem>>, %arg3: memref<8x128xf32, #tpu.memory_space<vmem>>, %arg4: memref<8x128xf32, #tpu.memory_space<vmem>>) attributes {dimension_semantics = [#tpu.dimension_semantics<parallel>, #tpu.dimension_semantics<arbitrary>], iteration_bounds = array<i64: 2, 1>, scalar_prefetch = 0 : i64, scratch_operands = 0 : i64, tpu.core_type = #tpu.core_type<tc>, window_params = [{transform_indices = @transform_0, window_bounds = array<i64: 8, 128>}, {transform_indices = @transform_1, window_bounds = array<i64: 8, 128>}, {transform_indices = @transform_2, window_bounds = array<i64: 8, 128>}]} {
    %c0_i32 = arith.constant 0 : i32
    %0 = arith.cmpi eq, %arg1, %c0_i32 : i32
    %1 = arith.extui %0 : i1 to i32
    %c0_i32_0 = arith.constant 0 : i32
    %2 = arith.cmpi ne, %1, %c0_i32_0 : i32
    scf.if %2 {
      %cst = arith.constant 0.000000e+00 : f32
      %17 = vector.broadcast %cst : f32 to vector<8x128xf32>
      %c0_9 = arith.constant 0 : index
      %c0_10 = arith.constant 0 : index
      %18 = vector.load %arg4[%c0_9, %c0_10] : memref<8x128xf32, #tpu.memory_space<vmem>>, vector<8x128xf32>
      tpu.vector_store %arg4[%c0_9, %c0_10], %17 {strides = array<i32>} : memref<8x128xf32, #tpu.memory_space<vmem>>, vector<8x128xf32>,
    } else {
    }
    %c0 = arith.constant 0 : index
    %c0_1 = arith.constant 0 : index
    %3 = vector.load %arg2[%c0, %c0_1] : memref<8x128xf32, #tpu.memory_space<vmem>>, vector<8x128xf32>
    %c0_2 = arith.constant 0 : index
    %c0_3 = arith.constant 0 : index
    %4 = vector.load %arg3[%c0_2, %c0_3] : memref<8x128xf32, #tpu.memory_space<vmem>>, vector<8x128xf32>
    %5 = arith.subf %3, %4 : vector<8x128xf32>
    %6 = arith.mulf %5, %5 : vector<8x128xf32>
    %c1_i32 = arith.constant 1 : i32
    %7 = arith.muli %arg0, %c1_i32 : i32
    %8 = arith.addi %7, %arg1 : i32
    %c8_i32 = arith.constant 8 : i32
    %9 = arith.muli %8, %c8_i32 : i32
    %c8_i32_4 = arith.constant 8 : i32
    %10 = arith.subi %c8_i32_4, %9 : i32
    %c8_i32_5 = arith.constant 8 : i32
    %11 = arith.cmpi sge, %10, %c8_i32_5 : i32
    %12 = arith.extui %11 : i1 to i32
    %c0_i32_6 = arith.constant 0 : i32
    %13 = arith.cmpi ne, %12, %c0_i32_6 : i32
    scf.if %13 {
      %c0_9 = arith.constant 0 : index
      %c0_10 = arith.constant 0 : index
      %17 = vector.load %arg4[%c0_9, %c0_10] : memref<8x128xf32, #tpu.memory_space<vmem>>, vector<8x128xf32>
      %18 = vector.shape_cast %6 : vector<8x128xf32> to vector<1x8x128xf32>
      %cst = arith.constant dense<0.000000e+00> : vector<8x128xf32>
      %19 = vector.multi_reduction <add>, %18, %cst [0] : vector<1x8x128xf32> to vector<8x128xf32>
      %20 = arith.addf %17, %19 : vector<8x128xf32>
      %c0_11 = arith.constant 0 : index
      %c0_12 = arith.constant 0 : index
      %21 = vector.load %arg4[%c0_11, %c0_12] : memref<8x128xf32, #tpu.memory_space<vmem>>, vector<8x128xf32>
      tpu.vector_store %arg4[%c0_11, %c0_12], %20 {strides = array<i32>} : memref<8x128xf32, #tpu.memory_space<vmem>>, vector<8x128xf32>,
    } else {
    }
    %c8_i32_7 = arith.constant 8 : i32
    %14 = arith.cmpi slt, %10, %c8_i32_7 : i32
    %15 = arith.extui %14 : i1 to i32
    %c0_i32_8 = arith.constant 0 : i32
    %16 = arith.cmpi ne, %15, %c0_i32_8 : i32
    scf.if %16 {
      %17 = tpu.iota {dimensions = array<i32: 0>} : vector<8x128xi32>
      %18 = vector.broadcast %10 : i32 to vector<8x128xi32>
      %19 = arith.cmpi slt, %17, %18 : vector<8x128xi32>
      %cst = arith.constant 0.000000e+00 : f32
      %20 = vector.broadcast %cst : f32 to vector<8x128xf32>
      %21 = arith.select %19, %6, %20 : vector<8x128xi1>, vector<8x128xf32>
      %c0_9 = arith.constant 0 : index
      %c0_10 = arith.constant 0 : index
      %22 = vector.load %arg4[%c0_9, %c0_10] : memref<8x128xf32, #tpu.memory_space<vmem>>, vector<8x128xf32>
      %23 = vector.shape_cast %21 : vector<8x128xf32> to vector<1x8x128xf32>
      %cst_11 = arith.constant dense<0.000000e+00> : vector<8x128xf32>
      %24 = vector.multi_reduction <add>, %23, %cst_11 [0] : vector<1x8x128xf32> to vector<8x128xf32>
      %25 = arith.addf %22, %24 : vector<8x128xf32>
      %c0_12 = arith.constant 0 : index
      %c0_13 = arith.constant 0 : index
      %26 = vector.load %arg4[%c0_12, %c0_13] : memref<8x128xf32, #tpu.memory_space<vmem>>, vector<8x128xf32>
      tpu.vector_store %arg4[%c0_12, %c0_13], %25 {strides = array<i32>} : memref<8x128xf32, #tpu.memory_space<vmem>>, vector<8x128xf32>,
    } else {
    }
    return
  }
  func.func @transform_0(%arg0: i32, %arg1: i32) -> (i32, i32) {
    %c1_i32 = arith.constant 1 : i32
    %0 = arith.muli %arg0, %c1_i32 : i32
    %1 = arith.addi %0, %arg1 : i32
    %c0_i32 = arith.constant 0 : i32
    %2 = arith.minsi %1, %c0_i32 : i32
    %c0_i32_0 = arith.constant 0 : i32
    %c0_i32_1 = arith.constant 0 : i32
    return %2, %c0_i32_0 : i32, i32
  }
  func.func @transform_1(%arg0: i32, %arg1: i32) -> (i32, i32) {
    %c1_i32 = arith.constant 1 : i32
    %0 = arith.muli %arg0, %c1_i32 : i32
    %1 = arith.addi %0, %arg1 : i32
    %c0_i32 = arith.constant 0 : i32
    %2 = arith.minsi %1, %c0_i32 : i32
    %c0_i32_0 = arith.constant 0 : i32
    %c0_i32_1 = arith.constant 0 : i32
    return %2, %c0_i32_0 : i32, i32
  }
  func.func @transform_2(%arg0: i32, %arg1: i32) -> (i32, i32) {
    %c0_i32 = arith.constant 0 : i32
    %c0_i32_0 = arith.constant 0 : i32
    return %arg0, %c0_i32 : i32, i32
  }
}

</mosaic_0001>

<llo_original>
// kernel: tpu_custom_call.1
$region0: #{tpu_custom_call.1}
  #allocation0 [shape = 'u32[]', space=smem, size = 0x4, offset = 0x4, fixed_abs, tag = 'smem constant byte address 0x4 - core index']
  #allocation1 [shape = 'u32[72,128]{1,0:T(1,128)}', space=vmem, size = 0x9000, scoped, tag = 'internal scratch']
  %s0 = inlined_call_operand.hbm [shape: f32[8,128], index: 0, kind: input, shape index: {}]
  %s1 = inlined_call_operand.hbm [shape: f32[8,128], index: 1, kind: input, shape index: {}]
  %s2 = inlined_call_operand.hbm [shape: f32[16,128], index: 2, kind: output, shape index: {}]
  %s3 = sld [smem:[#allocation0]]
  $region61: #{tpu_custom_call.1} parent=0
    _
  %s5 = ssub.s32 1, %s3
  %s6 = scalar_select 0, %s5, %s3
  $region1: #{tpu_custom_call.1} parent=0
    #allocation2 [shape = 'u8[8192]{0}', space=vmem, size = 0x2000, scoped, tag = 'input window, operand 0']
    #allocation3 [shape = 's32[2]{0}', space=sflag, size = 0x8, scoped, tag = 'scoped memory for tpu_custom_call.1']
    #allocation4 [shape = 's32[2]{0}', space=sflag, size = 0x8, scoped, tag = 'scoped memory for tpu_custom_call.1']
    #allocation5 [shape = 'u8[8192]{0}', space=vmem, size = 0x2000, scoped, tag = 'input window, operand 1']
    #allocation6 [shape = 's32[2]{0}', space=sflag, size = 0x8, scoped, tag = 'scoped memory for tpu_custom_call.1']
    #allocation7 [shape = 'u8[8192]{0}', space=vmem, size = 0x2000, scoped, tag = 'output window, operand 0']
    %7 = vsyncpa [#allocation3], 0
    %s8 = scalar_lea.sflag [#allocation3], 1
    %9 = vsyncpa %s8, 0
    %10 = vsyncpa [#allocation6], 0
    %s11 = scalar_lea.sflag [#allocation6], 1
    %12 = vsyncpa %s11, 0
    %13 = vsyncpa [#allocation4], 0
    %s14 = scalar_lea.sflag [#allocation4], 1
    %15 = vsyncpa %s14, 0
    loop: start=0, step=1, limit=4
    $region2: #{tpu_custom_call.1} parent=1 // loop_pre_header
      _
    $region3: #{tpu_custom_call.1} parent=1 // loop_header
      %s17 = sphi 0, %s21
      %p18 = scmp.ge.s32.totalorder %s17, 4
      %s24 = sphi 0, %s36
      %s25 = sphi 0, %s32
      %s26 = sphi 0, %s24
      %s27 = sphi 0, %s25
      %s28 = sphi 0, %s26
      %s29 = sphi 0, %s27
      %s45 = sphi 0, %s47
      %s48 = sphi 0, %s45
      %s49 = sphi 0, %s48
      %s65 = sphi 0, %s49
      %s77 = sphi 0, %s79
      %s80 = sphi 0, %s77
      %s81 = sphi 0, %s80
      %s97 = sphi 0, %s81
      %s103 = sphi 0, %s105
      %s106 = sphi 0, %s103
      %s107 = sphi 0, %s106
      %s123 = sphi 0, %s107
    $region4: #{tpu_custom_call.1} parent=1 // loop_header_branch
      %20 = sbr.rel (%p18) target = $region8
    $region5: #{tpu_custom_call.1} parent=1 // loop_body
      %s22 = ssub.s32 %s17, 1
      %s23 = ssub.s32 %s17, 2
      %s30 = sadd.s32 1, %s25
      %p31 = scmp.ge.s32.totalorder %s30, 1
      %s32 = scalar_select %p31, 0, %s30
      %s33 = sadd.s32 1, %s24
      %s34 = scalar_select %p31, %s33, %s24
      %p35 = scmp.ge.s32.totalorder %s34, 2
      %s36 = scalar_select %p35, 0, %s34
      %s37 = sadd.s32 %s24, %s25
      %p38 = scmp.lt.s32.totalorder %s37, 0
      %s39 = scalar_select %p38, %s37, 0
      %s40 = sadd.s32 %s36, %s32
      %p41 = scmp.lt.s32.totalorder %s40, 0
      %s42 = scalar_select %p41, %s40, 0
      %s43 = ssub.s32 %s39, %s42
      %p44 = scmp.eq.s32.totalorder %s43, 0
      %s46 = sadd.s32 %s45, 1
      %s47 = scalar_select %p44, %s45, %s46
      %p50 = pneg %p44
      %p51 = scmp.eq.s32.totalorder %s17, 1
      %p52 = por %p50, %p51
      %p53 = scmp.ne.s32.totalorder %s45, %s48
      %p54 = scmp.eq.s32.totalorder %s17, 0
      %p55 = por %p53, %p54
      %p56 = scmp.ne.s32.totalorder %s45, %s48
      %p57 = scmp.eq.s32.totalorder %s22, 1
      %p58 = por %p56, %p57
      %p59 = scmp.ne.s32.totalorder %s48, %s49
      %p60 = scmp.eq.s32.totalorder %s22, 0
      %p61 = por %p59, %p60
      %p62 = scmp.ne.s32.totalorder %s48, %s49
      %p63 = scmp.eq.s32.totalorder %s23, 1
      %p64 = por %p62, %p63
      %p66 = scmp.ne.s32.totalorder %s49, %s65
      %p67 = scmp.eq.s32.totalorder %s23, 0
      %p68 = por %p66, %p67
      %s69 = sadd.s32 %s24, %s25
      %p70 = scmp.lt.s32.totalorder %s69, 0
      %s71 = scalar_select %p70, %s69, 0
      %s72 = sadd.s32 %s36, %s32
      %p73 = scmp.lt.s32.totalorder %s72, 0
      %s74 = scalar_select %p73, %s72, 0
      %s75 = ssub.s32 %s71, %s74
      %p76 = scmp.eq.s32.totalorder %s75, 0
      %s78 = sadd.s32 %s77, 1
      %s79 = scalar_select %p76, %s77, %s78
      %p82 = pneg %p76
      %p83 = scmp.eq.s32.totalorder %s17, 1
      %p84 = por %p82, %p83
      %p85 = scmp.ne.s32.totalorder %s77, %s80
      %p86 = scmp.eq.s32.totalorder %s17, 0
      %p87 = por %p85, %p86
      %p88 = scmp.ne.s32.totalorder %s77, %s80
      %p89 = scmp.eq.s32.totalorder %s22, 1
      %p90 = por %p88, %p89
      %p91 = scmp.ne.s32.totalorder %s80, %s81
      %p92 = scmp.eq.s32.totalorder %s22, 0
      %p93 = por %p91, %p92
      %p94 = scmp.ne.s32.totalorder %s80, %s81
      %p95 = scmp.eq.s32.totalorder %s23, 1
      %p96 = por %p94, %p95
      %p98 = scmp.ne.s32.totalorder %s81, %s97
      %p99 = scmp.eq.s32.totalorder %s23, 0
      %p100 = por %p98, %p99
      %s101 = ssub.s32 %s24, %s36
      %p102 = scmp.eq.s32.totalorder %s101, 0
      %s104 = sadd.s32 %s103, 1
      %s105 = scalar_select %p102, %s103, %s104
      %p108 = pneg %p102
      %p109 = scmp.eq.s32.totalorder %s17, 1
      %p110 = por %p108, %p109
      %p111 = scmp.ne.s32.totalorder %s103, %s106
      %p112 = scmp.eq.s32.totalorder %s17, 0
      %p113 = por %p111, %p112
      %p114 = scmp.ne.s32.totalorder %s103, %s106
      %p115 = scmp.eq.s32.totalorder %s22, 1
      %p116 = por %p114, %p115
      %p117 = scmp.ne.s32.totalorder %s106, %s107
      %p118 = scmp.eq.s32.totalorder %s22, 0
      %p119 = por %p117, %p118
      %p120 = scmp.ne.s32.totalorder %s106, %s107
      %p121 = scmp.eq.s32.totalorder %s23, 1
      %p122 = por %p120, %p121
      %p124 = scmp.ne.s32.totalorder %s107, %s123
      %p125 = scmp.eq.s32.totalorder %s23, 0
      %p126 = por %p124, %p125
      %p127 = scmp.le.s32.totalorder 1, %s17
      %p128 = scmp.lt.s32.totalorder %s17, 3
      %p129 = pnand %p127, %p128
      %p130 = pneg %p129
      // Predicated region
      $region9: #{tpu_custom_call.1} parent=5 // pred_check
        _
      $region10: #{tpu_custom_call.1} parent=5 // pred_check_branch
        %132 = sbr.rel (%p129) target = $region12
      $region11: #{tpu_custom_call.1} parent=5 // pred_region
        %s133 = ssub.s32 %s17, 1
      $region12: #{tpu_custom_call.1} parent=5 // pred_fallthru
        _
      %p134 = scmp.lt.s32.totalorder %s17, 2
      // Predicated region
      $region13: #{tpu_custom_call.1} parent=5 // pred_check
        %p135 = pneg %p134
      $region14: #{tpu_custom_call.1} parent=5 // pred_check_branch
        %137 = sbr.rel (%p135) target = $region16
      $region15: #{tpu_custom_call.1} parent=5 // pred_region
        // Predicated region
        $region17: #{tpu_custom_call.1} parent=15 // pred_check
          %p138 = pneg %p55
        $region18: #{tpu_custom_call.1} parent=15 // pred_check_branch
          %140 = sbr.rel (%p138) target = $region20
        $region19: #{tpu_custom_call.1} parent=15 // pred_region
          %s141 = sand.u32 %s45, 1
          %s142 = scalar_lea.sflag [#allocation3], %s141
          %s143 = sand.u32 %s45, 1
          %s144 = smul.addr %s143, 8
          %s145 = scalar_lea.vmem [#allocation2], %s144
          %s146 = sadd.s32 %s24, %s25
          %p147 = scmp.lt.s32.totalorder %s146, 0
          %s148 = scalar_select %p147, %s146, 0
          %150 = vsyncadd %s142, 0
          %s151 = smul.addr %s148, 8
          %s152 = scalar_lea.hbm %s0, %s151
          %s154 = sshll.u32 %s152, 4
          %s155 = int_to_ptr.hbm [resolvable:$true] %s154
          %s156 = sshll.u32 %s145, 4
          %s157 = int_to_ptr.vmem [resolvable:$true] %s156
          %159 = dma.hbm_to_vmem [thread:$0]  %s155, 128, %s157, %s142
        $region20: #{tpu_custom_call.1} parent=15 // pred_fallthru
          _
        // Predicated region
        $region21: #{tpu_custom_call.1} parent=15 // pred_check
          %p160 = pneg %p87
        $region22: #{tpu_custom_call.1} parent=15 // pred_check_branch
          %162 = sbr.rel (%p160) target = $region24
        $region23: #{tpu_custom_call.1} parent=15 // pred_region
          %s163 = sand.u32 %s77, 1
          %s164 = scalar_lea.sflag [#allocation6], %s163
          %s165 = sand.u32 %s77, 1
          %s166 = smul.addr %s165, 8
          %s167 = scalar_lea.vmem [#allocation5], %s166
          %s168 = sadd.s32 %s24, %s25
          %p169 = scmp.lt.s32.totalorder %s168, 0
          %s170 = scalar_select %p169, %s168, 0
          %172 = vsyncadd %s164, 0
          %s173 = smul.addr %s170, 8
          %s174 = scalar_lea.hbm %s1, %s173
          %s176 = sshll.u32 %s174, 4
          %s177 = int_to_ptr.hbm [resolvable:$true] %s176
          %s178 = sshll.u32 %s167, 4
          %s179 = int_to_ptr.vmem [resolvable:$true] %s178
          %181 = dma.hbm_to_vmem [thread:$0]  %s177, 128, %s179, %s164
        $region24: #{tpu_custom_call.1} parent=15 // pred_fallthru
          _
      $region16: #{tpu_custom_call.1} parent=5 // pred_fallthru
        _
      %p182 = scmp.le.s32.totalorder 1, %s17
      %p183 = scmp.lt.s32.totalorder %s17, 3
      %p184 = pnand %p182, %p183
      %p185 = pneg %p184
      // Predicated region
      $region25: #{tpu_custom_call.1} parent=5 // pred_check
        _
      $region26: #{tpu_custom_call.1} parent=5 // pred_check_branch
        %187 = sbr.rel (%p184) target = $region28
      $region27: #{tpu_custom_call.1} parent=5 // pred_region
        %s188 = ssub.s32 %s17, 1
        %s189 = sand.u32 %s48, 1
        %s190 = scalar_lea.sflag [#allocation3], %s189
        %s191 = sand.u32 %s48, 1
        %s192 = smul.addr %s191, 8
        %s193 = scalar_lea.vmem [#allocation2], %s192
        // Predicated region
        $region29: #{tpu_custom_call.1} parent=27 // pred_check
          %p194 = pneg %p61
        $region30: #{tpu_custom_call.1} parent=27 // pred_check_branch
          %196 = sbr.rel (%p194) target = $region32
        $region31: #{tpu_custom_call.1} parent=27 // pred_region
          %198 = dma.done %s190, 128
        $region32: #{tpu_custom_call.1} parent=27 // pred_fallthru
          _
        %s199 = sand.u32 %s80, 1
        %s200 = scalar_lea.sflag [#allocation6], %s199
        %s201 = sand.u32 %s80, 1
        %s202 = smul.addr %s201, 8
        %s203 = scalar_lea.vmem [#allocation5], %s202
        // Predicated region
        $region33: #{tpu_custom_call.1} parent=27 // pred_check
          %p204 = pneg %p93
        $region34: #{tpu_custom_call.1} parent=27 // pred_check_branch
          %206 = sbr.rel (%p204) target = $region36
        $region35: #{tpu_custom_call.1} parent=27 // pred_region
          %208 = dma.done %s200, 128
        $region36: #{tpu_custom_call.1} parent=27 // pred_fallthru
          _
        %s209 = sand.u32 %s48, 1
        %s210 = scalar_lea.sflag [#allocation3], %s209
        %s211 = sand.u32 %s48, 1
        %s212 = smul.addr %s211, 8
        %s213 = scalar_lea.vmem [#allocation2], %s212
        %p214 = pneg %p61
        %p215 = pneg %p58
        %s216 = sand.u32 %s80, 1
        %s217 = scalar_lea.sflag [#allocation6], %s216
        %s218 = sand.u32 %s80, 1
        %s219 = smul.addr %s218, 8
        %s220 = scalar_lea.vmem [#allocation5], %s219
        %p221 = pneg %p93
        %p222 = pneg %p90
        %p223 = pneg %p119
        %p224 = pneg %p116
        %s225 = sand.u32 %s106, 1
        %s226 = scalar_lea.sflag [#allocation4], %s225
        %s227 = sand.u32 %s106, 1
        %s228 = smul.addr %s227, 8
        %s229 = scalar_lea.vmem [#allocation7], %s228
        %s230 = sadd.s32 %s26, %s27
        %p231 = scmp.lt.s32.totalorder %s230, 0
        %s232 = scalar_select %p231, %s230, 0
        %s233 = sadd.s32 %s26, %s27
        %p234 = scmp.lt.s32.totalorder %s233, 0
        %s235 = scalar_select %p234, %s233, 0
        %p236 = scmp.eq.s32.totalorder %s27, 0
        // Predicated region
        $region37: #{tpu_custom_call.1} parent=27 // pred_check
          %p237 = pneg %p236
        $region38: #{tpu_custom_call.1} parent=27 // pred_check_branch
          %239 = sbr.rel (%p237) target = $region40
        $region39: #{tpu_custom_call.1} parent=27 // pred_region
          %240 = vst [vmem:[%s229] sm:$0xff] 0.0
        $region40: #{tpu_custom_call.1} parent=27 // pred_fallthru
          _
        %v241 = vld [vmem:[%s193] sm:$0xff]
        %v242 = vld [vmem:[%s203] sm:$0xff]
        %v243 = vsub.f32 %v241, %v242
        %v244 = vmul.f32 %v243, %v243
        %s245 = sadd.s32 %s26, %s27
        %s246 = smul.u32 %s245, 8
        %s247 = ssub.s32 8, %s246
        %p248 = scmp.ge.s32.totalorder %s247, 8
        // Predicated region
        $region41: #{tpu_custom_call.1} parent=27 // pred_check
          %p249 = pneg %p248
        $region42: #{tpu_custom_call.1} parent=27 // pred_check_branch
          %251 = sbr.rel (%p249) target = $region44
        $region43: #{tpu_custom_call.1} parent=27 // pred_region
          %v252 = vld [vmem:[%s229] sm:$0xff]
          %v253 = vadd.f32 %v244, 0.0
          %v254 = vadd.f32 %v252, %v253
          %255 = vst [vmem:[%s229] sm:$0xff] %v254
        $region44: #{tpu_custom_call.1} parent=27 // pred_fallthru
          _
        %p256 = scmp.lt.s32.totalorder %s247, 8
        // Predicated region
        $region45: #{tpu_custom_call.1} parent=27 // pred_check
          %p257 = pneg %p256
        $region46: #{tpu_custom_call.1} parent=27 // pred_check_branch
          %259 = sbr.rel (%p257) target = $region48
        $region47: #{tpu_custom_call.1} parent=27 // pred_region
          %v260 = vlaneseq
          %v261 = vshrl.u32 %v260, 7
          %v262 = vstv %s247
          %vm263 = vcmp.lt.s32.totalorder %v261, %v262
          %v264 = vsel %vm263, %v244, 0.0
          %v265 = vld [vmem:[%s229] sm:$0xff]
          %v266 = vadd.f32 %v264, 0.0
          %v267 = vadd.f32 %v265, %v266
          %268 = vst [vmem:[%s229] sm:$0xff] %v267
        $region48: #{tpu_custom_call.1} parent=27 // pred_fallthru
          _
        %s269 = sand.u32 %s106, 1
        %s270 = scalar_lea.sflag [#allocation4], %s269
        %s271 = sand.u32 %s106, 1
        %s272 = smul.addr %s271, 8
        %s273 = scalar_lea.vmem [#allocation7], %s272
        // Predicated region
        $region49: #{tpu_custom_call.1} parent=27 // pred_check
          %p274 = pneg %p116
        $region50: #{tpu_custom_call.1} parent=27 // pred_check_branch
          %276 = sbr.rel (%p274) target = $region52
        $region51: #{tpu_custom_call.1} parent=27 // pred_region
          %278 = vsyncadd %s270, 0
          %s279 = smul.addr %s26, 8
          %s280 = scalar_lea.hbm %s2, %s279
          %s282 = sshll.u32 %s273, 4
          %s283 = int_to_ptr.vmem [resolvable:$true] %s282
          %s284 = sshll.u32 %s280, 4
          %s285 = int_to_ptr.hbm [resolvable:$true] %s284
          %287 = dma.vmem_to_hbm [thread:$0]  %s283, 128, %s285, %s270
        $region52: #{tpu_custom_call.1} parent=27 // pred_fallthru
          _
      $region28: #{tpu_custom_call.1} parent=5 // pred_fallthru
        _
      %p288 = scmp.le.s32.totalorder 2, %s17
      // Predicated region
      $region53: #{tpu_custom_call.1} parent=5 // pred_check
        %p289 = pneg %p288
      $region54: #{tpu_custom_call.1} parent=5 // pred_check_branch
        %291 = sbr.rel (%p289) target = $region56
      $region55: #{tpu_custom_call.1} parent=5 // pred_region
        %s292 = ssub.s32 %s17, 2
        // Predicated region
        $region57: #{tpu_custom_call.1} parent=55 // pred_check
          %p293 = pneg %p122
        $region58: #{tpu_custom_call.1} parent=55 // pred_check_branch
          %295 = sbr.rel (%p293) target = $region60
        $region59: #{tpu_custom_call.1} parent=55 // pred_region
          %s296 = sand.u32 %s107, 1
          %s297 = scalar_lea.sflag [#allocation4], %s296
          %s298 = sand.u32 %s107, 1
          %s299 = smul.addr %s298, 8
          %s300 = scalar_lea.vmem [#allocation7], %s299
          %302 = dma.done %s297, 128
        $region60: #{tpu_custom_call.1} parent=55 // pred_fallthru
          _
      $region56: #{tpu_custom_call.1} parent=5 // pred_fallthru
        _
    $region6: #{tpu_custom_call.1} parent=1 // loop_footer
      %s21 = sadd.s32 1, %s17
    $region7: #{tpu_custom_call.1} parent=1 // loop_footer_branch
      %16 = sbr.rel target = $region3
    $region8: #{tpu_custom_call.1} parent=1 // loop_exit
      _
    %303 = vsyncpa [#allocation3], 1
    %s304 = scalar_lea.sflag [#allocation3], 1
    %305 = vsyncpa %s304, 1
    %306 = vsyncpa [#allocation6], 1
    %s307 = scalar_lea.sflag [#allocation6], 1
    %308 = vsyncpa %s307, 1
    %309 = vsyncpa [#allocation4], 1
    %s310 = scalar_lea.sflag [#allocation4], 1
    %311 = vsyncpa %s310, 1

</llo_original>
